<compile_context>
chip_gen: v5e
topology: v5e:2x2
jax: 0.10.0
libtpu: 0.0.40
codegen_flags: <defaults>
</compile_context>

<pallas_src>
import functools

import jax
import jax.numpy as jnp
from jax.experimental import pallas as pl
from jax.experimental.pallas import tpu as pltpu

_LANE = 128  # TPU lane width; pad all feature dims to multiples of this.
# Conservative fused-path budget: fits inside every generation's scoped VMEM
# default (32 MiB) and leaves headroom on v7x's 64 MiB physical VMEM.
_FUSED_VMEM_BUDGET = 28 * 1024 * 1024


def _round_up(x: int, m: int) -> int:
    return (x + m - 1) // m * m


def _vmem_limit(nbytes: int) -> int:
    """Scoped-VMEM limit from actual buffer arithmetic (+ Mosaic headroom)."""
    return int(min(max(nbytes + (4 << 20), 8 << 20), 64 << 20))


def _pad2d(a, rows: int, cols: int):
    return jnp.pad(a, ((0, rows - a.shape[0]), (0, cols - a.shape[1])))


# ----------------------------------------------------------------------------
# N-aware tiling plans
# ----------------------------------------------------------------------------
def _plan_agg(n: int, fo_pad_max: int):
    """Plan the A_hat @ XW sweep.

    Returns (n_pad, tm, tk, vmem_bytes).  tk is None for the fused path
    (XW slab VMEM-resident, whole reduction in one dot per row stripe);
    otherwise the k-tiled accumulator fallback is used (huge graphs only).
    """
    # Padding granularity grows with N so padded bytes/FLOPs stay small
    # relative to the real work (A_hat traffic scales as n_pad^2).
    if n <= 512:
        n_pad = _round_up(n, 128)
    elif n <= 4096:
        n_pad = _round_up(n, 256)
    else:
        n_pad = _round_up(n, 512)

    # Fused path: prefer the largest row tile that divides n_pad and fits VMEM.
    tm_candidates = ([n_pad] if n_pad <= 1024 else []) + [512, 256, 128]
    for tm in tm_candidates:
        if n_pad % tm:
            continue
        fused_bytes = (
            2 * tm * n_pad * 2          # A_hat row stripe (bf16), double buffered
            + n_pad * fo_pad_max * 2    # resident XW slab (bf16)
            + 2 * tm * fo_pad_max * 4   # output tile (f32 worst case), double buffered
            + 4 * fo_pad_max            # resident bias (f32)
        )
        if fused_bytes <= _FUSED_VMEM_BUDGET:
            return n_pad, tm, None, fused_bytes

    # Huge-graph fallback: k-tiled accumulator sweep with large tiles.
    tm, tk = 512, 2048
    n_pad = _round_up(n, tk)
    acc_bytes = (
        2 * tm * tk * 2                 # A_hat tile, double buffered
        + 2 * tk * fo_pad_max * 2       # XW tile, double buffered
        + 2 * tm * fo_pad_max * 4       # output tile, double buffered
        + tm * fo_pad_max * 4           # f32 accumulator
        + 4 * fo_pad_max                # bias
    )
    return n_pad, tm, tk, acc_bytes


def _plan_xw(n_pad: int, fin_pad: int, fo_pad: int):
    """Row tile for the X @ W kernel: single step for small graphs, else large."""
    budget = 24 * 1024 * 1024
    for tm in ([n_pad] if n_pad <= 1024 else []) + [1024, 512, 256, 128]:
        if n_pad % tm:
            continue
        nbytes = 2 * tm * fin_pad * 2 + fin_pad * fo_pad * 2 + 2 * tm * fo_pad * 2
        if nbytes <= budget:
            return tm, nbytes
    tm = 128
    nbytes = 2 * tm * fin_pad * 2 + fin_pad * fo_pad * 2 + 2 * tm * fo_pad * 2
    return tm, nbytes


# ----------------------------------------------------------------------------
# Kernel 1: XW = X @ W   (row-tiled; W resident in VMEM across the grid)
# ----------------------------------------------------------------------------
def _xw_kernel(x_ref, w_ref, o_ref):
    o_ref[...] = jnp.dot(
        x_ref[...], w_ref[...], preferred_element_type=jnp.float32
    ).astype(o_ref.dtype)


def _xw_pallas(x, w):
    n_pad, fin_pad = x.shape
    fo_pad = w.shape[1]
    tm, nbytes = _plan_xw(n_pad, fin_pad, fo_pad)
    return pl.pallas_call(
        _xw_kernel,
        out_shape=jax.ShapeDtypeStruct((n_pad, fo_pad), jnp.bfloat16),
        grid_spec=pltpu.PrefetchScalarGridSpec(
            num_scalar_prefetch=0,
            grid=(n_pad // tm,),
            in_specs=[
                pl.BlockSpec((tm, fin_pad), lambda i: (i, 0)),
                pl.BlockSpec((fin_pad, fo_pad), lambda i: (0, 0)),  # W resident
            ],
            out_specs=pl.BlockSpec((tm, fo_pad), lambda i: (i, 0)),
        ),
        compiler_params=pltpu.CompilerParams(
            dimension_semantics=("parallel",),
            vmem_limit_bytes=_vmem_limit(nbytes),
        ),
    )(x, w)


# ----------------------------------------------------------------------------
# Kernel 2a (fused path): out = [relu]( A_stripe @ XW + b ), XW fully resident
# ----------------------------------------------------------------------------
def _agg_fused_kernel(a_ref, xw_ref, b_ref, o_ref, *, apply_relu: bool):
    y = jnp.dot(a_ref[...], xw_ref[...], preferred_element_type=jnp.float32)
    y = y + b_ref[...]  # f32 epilogue (bias broadcast)
    if apply_relu:
        y = jnp.maximum(y, 0.0)
    o_ref[...] = y.astype(o_ref.dtype)


def _aggregate_fused(a_hat, xw, b, *, tm, vmem_bytes, apply_relu, out_dtype):
    n_pad = a_hat.shape[0]
    fo_pad = xw.shape[1]
    flops = 2 * n_pad * n_pad * fo_pad
    bytes_accessed = (
        n_pad * n_pad * 2                                    # A_hat streamed once
        + n_pad * fo_pad * 2                                 # XW read once (resident)
        + n_pad * fo_pad * jnp.dtype(out_dtype).itemsize     # output
    )
    return pl.pallas_call(
        functools.partial(_agg_fused_kernel, apply_relu=apply_relu),
        out_shape=jax.ShapeDtypeStruct((n_pad, fo_pad), out_dtype),
        grid_spec=pltpu.PrefetchScalarGridSpec(
            num_scalar_prefetch=0,
            grid=(n_pad // tm,),
            in_specs=[
                # A_hat row stripe, streamed exactly once.
                # TODO(synk): if xprof shows exposed DMA here, add
                # pipeline_mode=pl.Buffered(3) to this spec.
                pl.BlockSpec((tm, n_pad), lambda i: (i, 0)),
                pl.BlockSpec((n_pad, fo_pad), lambda i: (0, 0)),  # XW resident
                pl.BlockSpec((1, fo_pad), lambda i: (0, 0)),      # bias resident
            ],
            out_specs=pl.BlockSpec((tm, fo_pad), lambda i: (i, 0)),
        ),
        compiler_params=pltpu.CompilerParams(
            # Row axis is independent -> "parallel" (megacore split on v7x).
            # TODO(synk): if profiling shows a single TC in use on v7x, switch
            # to pltpu.CORE_PARALLEL on this axis.
            dimension_semantics=("parallel",),
            vmem_limit_bytes=_vmem_limit(vmem_bytes),
        ),
        cost_estimate=pl.CostEstimate(
            flops=flops, transcendentals=0, bytes_accessed=bytes_accessed
        ),
    )(a_hat, xw, b.reshape(1, -1))


# ----------------------------------------------------------------------------
# Kernel 2b (huge-graph fallback): k-tiled rows x reduction with f32 accumulator
# ----------------------------------------------------------------------------
def _agg_ktiled_kernel(a_ref, xw_ref, b_ref, o_ref, acc_ref, *, apply_relu: bool):
    k = pl.program_id(1)

    @pl.when(k == 0)
    def _():
        acc_ref[...] = jnp.zeros_like(acc_ref)

    acc_ref[...] += jnp.dot(
        a_ref[...], xw_ref[...], preferred_element_type=jnp.float32
    )

    @pl.when(k == pl.num_programs(1) - 1)
    def _():
        y = acc_ref[...] + b_ref[...]
        if apply_relu:
            y = jnp.maximum(y, 0.0)
        o_ref[...] = y.astype(o_ref.dtype)


def _aggregate_ktiled(a_hat, xw, b, *, tm, tk, vmem_bytes, apply_relu, out_dtype):
    n_pad = a_hat.shape[0]
    fo_pad = xw.shape[1]
    grid = (n_pad // tm, n_pad // tk)
    flops = 2 * n_pad * n_pad * fo_pad
    bytes_accessed = (
        n_pad * n_pad * 2
        + n_pad * fo_pad * 2 * (n_pad // tm)
        + n_pad * fo_pad * jnp.dtype(out_dtype).itemsize
    )
    return pl.pallas_call(
        functools.partial(_agg_ktiled_kernel, apply_relu=apply_relu),
        out_shape=jax.ShapeDtypeStruct((n_pad, fo_pad), out_dtype),
        grid_spec=pltpu.PrefetchScalarGridSpec(
            num_scalar_prefetch=0,
            grid=grid,
            in_specs=[
                pl.BlockSpec((tm, tk), lambda i, k: (i, k)),        # A_hat stream
                pl.BlockSpec((tk, fo_pad), lambda i, k: (k, 0)),    # XW tile
                pl.BlockSpec((1, fo_pad), lambda i, k: (0, 0)),     # bias resident
            ],
            out_specs=pl.BlockSpec((tm, fo_pad), lambda i, k: (i, 0)),
            scratch_shapes=[pltpu.VMEM((tm, fo_pad), jnp.float32)],
        ),
        compiler_params=pltpu.CompilerParams(
            dimension_semantics=("parallel", "arbitrary"),
            vmem_limit_bytes=_vmem_limit(vmem_bytes),
        ),
        cost_estimate=pl.CostEstimate(
            flops=flops, transcendentals=0, bytes_accessed=bytes_accessed
        ),
    )(a_hat, xw, b.reshape(1, -1))


# ----------------------------------------------------------------------------
# Model glue: parameter init, adjacency normalization, padded forward pass
# ----------------------------------------------------------------------------
def init_gcn2017_params(key, in_dim, hidden_dim, out_dim, n_layers=2):
    if n_layers < 2:
        raise ValueError(f"n_layers must be >= 2: {n_layers}")
    dims = [in_dim] + [hidden_dim] * (n_layers - 1) + [out_dim]
    params = []
    for i in range(n_layers):
        key, sub = jax.random.split(key)
        fan_in, fan_out = dims[i], dims[i + 1]
        limit = jnp.sqrt(6.0 / (fan_in + fan_out))  # glorot-uniform (PyG default)
        w = jax.random.uniform(sub, (fan_in, fan_out), jnp.float32, -limit, limit)
        b = jnp.zeros((fan_out,), jnp.float32)      # PyG GCNConv bias init: zeros
        params.append((w, b))
    return params


def normalized_adjacency(adj, n):
    """A_hat = D^-1/2 (A + I) D^-1/2 (GCNConv symmetric normalization)."""
    a = adj + jnp.eye(n, dtype=jnp.float32)
    deg = jnp.sum(a, axis=1)
    d_inv_sqrt = jnp.where(deg > 0, 1.0 / jnp.sqrt(deg), 0.0)
    return d_inv_sqrt[:, None] * a * d_inv_sqrt[None, :]


def prepare_gcn2017(x, a_hat, params):
    """Pad & cast operands ONCE (hoisted out of the per-forward path).

    Returns (x_p, a_p, params_p, plan) for gcn2017_apply_padded.  The padded
    bf16 A_hat / W / b are meant to be built once and reused across forwards.
    """
    n, in_dim = x.shape
    fo_pad_max = max(_round_up(w.shape[1], _LANE) for w, _ in params)
    n_pad, tm, tk, vmem_bytes = _plan_agg(n, fo_pad_max)

    x_p = _pad2d(x, n_pad, _round_up(in_dim, _LANE)).astype(jnp.bfloat16)
    a_p = _pad2d(a_hat, n_pad, n_pad).astype(jnp.bfloat16)
    params_p = []
    for w, b in params:
        fi_p = _round_up(w.shape[0], _LANE)
        fo_p = _round_up(w.shape[1], _LANE)
        params_p.append(
            (
                _pad2d(w, fi_p, fo_p).astype(jnp.bfloat16),
                jnp.pad(b, (0, fo_p - b.shape[0])).astype(jnp.float32),
            )
        )
    plan = dict(
        n=n, out_dim=params[-1][0].shape[1],
        n_pad=n_pad, tm=tm, tk=tk, vmem_bytes=vmem_bytes,
    )
    return x_p, a_p, params_p, plan


def gcn2017_apply_padded(x_p, a_p, params_p, plan):
    """Forward on pre-padded operands: (XW kernel, A@XW kernel) per layer."""
    n, out_dim = plan["n"], plan["out_dim"]
    tm, tk, vmem_bytes = plan["tm"], plan["tk"], plan["vmem_bytes"]

    h = x_p
    n_layers = len(params_p)
    for i, (w, b) in enumerate(params_p):
        # TODO(synk): training-mode dropout(p=0.6) omitted (eval mode => identity).
        last = i == n_layers - 1
        out_dtype = jnp.float32 if last else jnp.bfloat16
        xw = _xw_pallas(h, w)                                  # hoisted X @ W
        if tk is None:
            h = _aggregate_fused(
                a_p, xw, b, tm=tm, vmem_bytes=vmem_bytes,
                apply_relu=not last, out_dtype=out_dtype,
            )
        else:
            h = _aggregate_ktiled(
                a_p, xw, b, tm=tm, tk=tk, vmem_bytes=vmem_bytes,
                apply_relu=not last, out_dtype=out_dtype,
            )
    return h[:n, :out_dim]


def gcn2017_apply(x, a_hat, params):
    """Convenience wrapper: prepare (pad/cast) + padded forward in one call."""
    x_p, a_p, params_p, plan = prepare_gcn2017(x, a_hat, params)
    return gcn2017_apply_padded(x_p, a_p, params_p, plan)


# ----------------------------------------------------------------------------
# Demo / smoke test
# ----------------------------------------------------------------------------
if __name__ == "__main__":
    N = 64
    IN_DIM = 16
    HIDDEN_DIM = 32
    OUT_DIM = 8
    N_LAYERS = 2

    key = jax.random.PRNGKey(0)
    k_x, k_adj, k_params = jax.random.split(key, 3)

    # Node features
    x = jax.random.normal(k_x, (N, IN_DIM), dtype=jnp.float32)

    # Random undirected adjacency (dense 0/1, symmetrized, no self loops)
    raw = jax.random.bernoulli(k_adj, p=0.08, shape=(N, N)).astype(jnp.float32)
    adj = jnp.clip(raw + raw.T, 0.0, 1.0) * (1.0 - jnp.eye(N, dtype=jnp.float32))
    a_hat = normalized_adjacency(adj, N)

    params = init_gcn2017_params(k_params, IN_DIM, HIDDEN_DIM, OUT_DIM, N_LAYERS)

    # Hoisted prepare: pad/cast A_hat, X, W, b exactly once, then jit the
    # padded forward (re-usable across many forwards without re-padding).
    x_p, a_p, params_p, plan = prepare_gcn2017(x, a_hat, params)
    fwd = jax.jit(functools.partial(gcn2017_apply_padded, plan=plan))
    out = jax.block_until_ready(fwd(x_p, a_p, params_p))
    assert out.shape == (N, OUT_DIM)

    # Reference 1: mirrors the kernel's bf16-input / f32-accumulate math.
    def reference_bf16(x, a_hat, params):
        a_bf = a_hat.astype(jnp.bfloat16)
        h = x.astype(jnp.bfloat16)
        y = None
        for i, (w, b) in enumerate(params):
            xw = jnp.dot(h, w.astype(jnp.bfloat16),
                         preferred_element_type=jnp.float32).astype(jnp.bfloat16)
            y = jnp.dot(a_bf, xw, preferred_element_type=jnp.float32) + b[None, :]
            if i < len(params) - 1:
                h = jnp.maximum(y, 0.0).astype(jnp.bfloat16)
        return y

    ref_bf = reference_bf16(x, a_hat, params)
    assert jnp.allclose(out, ref_bf, atol=2e-3, rtol=2e-3), (
        float(jnp.max(jnp.abs(out - ref_bf)))
    )

    # Reference 2: full-f32 semantics of the PyTorch module (looser tolerance,
    # since the kernel uses bf16 MXU inputs).
    ref = x
    for i, (w, b) in enumerate(params):
        ref = a_hat @ (ref @ w) + b[None, :]
        if i < len(params) - 1:
            ref = jnp.maximum(ref, 0.0)
    assert jnp.allclose(out, ref, atol=5e-2, rtol=5e-2), (
        float(jnp.max(jnp.abs(out - ref)))
    )

    print("KERNEL_OK")
</pallas_src>

<mosaic_0001>
module attributes {stable_mosaic.version = 11 : i64} {
  func.func @_xw_kernel(%arg0: i32, %arg1: memref<128x128xbf16, #tpu.memory_space<vmem>>, %arg2: memref<128x128xbf16, #tpu.memory_space<vmem>>, %arg3: memref<128x128xbf16, #tpu.memory_space<vmem>>) attributes {dimension_semantics = [#tpu.dimension_semantics<parallel>], iteration_bounds = array<i64: 1>, scalar_prefetch = 0 : i64, scratch_operands = 0 : i64, tpu.core_type = #tpu.core_type<tc>, window_params = [{transform_indices = @transform_0, window_bounds = array<i64: 128, 128>}, {pipeline_mode = #tpu.pipeline_mode<synchronous>, transform_indices = @transform_1, window_bounds = array<i64: 128, 128>}, {transform_indices = @transform_2, window_bounds = array<i64: 128, 128>}]} {
    %c0 = arith.constant 0 : index
    %c0_0 = arith.constant 0 : index
    %0 = vector.load %arg1[%c0, %c0_0] : memref<128x128xbf16, #tpu.memory_space<vmem>>, vector<128x128xbf16>
    %c0_1 = arith.constant 0 : index
    %c0_2 = arith.constant 0 : index
    %1 = vector.load %arg2[%c0_1, %c0_2] : memref<128x128xbf16, #tpu.memory_space<vmem>>, vector<128x128xbf16>
    %cst = arith.constant dense<0.000000e+00> : vector<128x128xf32>
    %2 = tpu.matmul %0, %1, %cst {dimension_numbers = #tpu.dot_dimension_numbers<[1], [0], [0], [1], [0, 0, 1, 1], [], []>} : vector<128x128xbf16>, vector<128x128xbf16>, vector<128x128xf32> -> vector<128x128xf32>
    %3 = arith.truncf %2 : vector<128x128xf32> to vector<128x128xbf16>
    %c0_3 = arith.constant 0 : index
    %c0_4 = arith.constant 0 : index
    %4 = vector.load %arg3[%c0_3, %c0_4] : memref<128x128xbf16, #tpu.memory_space<vmem>>, vector<128x128xbf16>
    tpu.vector_store %arg3[%c0_3, %c0_4], %3 {strides = array<i32>} : memref<128x128xbf16, #tpu.memory_space<vmem>>, vector<128x128xbf16>,
    return
  }
  func.func @transform_0(%arg0: i32) -> (i32, i32) {
    %c0_i32 = arith.constant 0 : i32
    %c0_i32_0 = arith.constant 0 : i32
    return %arg0, %c0_i32 : i32, i32
  }
  func.func @transform_1(%arg0: i32) -> (i32, i32) {
    %c0_i32 = arith.constant 0 : i32
    %c0_i32_0 = arith.constant 0 : i32
    %c0_i32_1 = arith.constant 0 : i32
    return %c0_i32, %c0_i32_0 : i32, i32
  }
  func.func @transform_2(%arg0: i32) -> (i32, i32) {
    %c0_i32 = arith.constant 0 : i32
    %c0_i32_0 = arith.constant 0 : i32
    return %arg0, %c0_i32 : i32, i32
  }
}

module attributes {stable_mosaic.version = 11 : i64} {
  func.func @_agg_fused_kernel(%arg0: i32, %arg1: memref<128x128xbf16, #tpu.memory_space<vmem>>, %arg2: memref<128x128xbf16, #tpu.memory_space<vmem>>, %arg3: memref<1x128xf32, #tpu.memory_space<vmem>>, %arg4: memref<128x128xf32, #tpu.memory_space<vmem>>) attributes {dimension_semantics = [#tpu.dimension_semantics<parallel>], iteration_bounds = array<i64: 1>, scalar_prefetch = 0 : i64, scratch_operands = 0 : i64, tpu.core_type = #tpu.core_type<tc>, window_params = [{transform_indices = @transform_0, window_bounds = array<i64: 128, 128>}, {pipeline_mode = #tpu.pipeline_mode<synchronous>, transform_indices = @transform_1, window_bounds = array<i64: 128, 128>}, {pipeline_mode = #tpu.pipeline_mode<synchronous>, transform_indices = @transform_2, window_bounds = array<i64: 1, 128>}, {transform_indices = @transform_3, window_bounds = array<i64: 128, 128>}]} {
    %c0 = arith.constant 0 : index
    %c0_0 = arith.constant 0 : index
    %0 = vector.load %arg1[%c0, %c0_0] : memref<128x128xbf16, #tpu.memory_space<vmem>>, vector<128x128xbf16>
    %c0_1 = arith.constant 0 : index
    %c0_2 = arith.constant 0 : index
    %1 = vector.load %arg2[%c0_1, %c0_2] : memref<128x128xbf16, #tpu.memory_space<vmem>>, vector<128x128xbf16>
    %cst = arith.constant dense<0.000000e+00> : vector<128x128xf32>
    %2 = tpu.matmul %0, %1, %cst {dimension_numbers = #tpu.dot_dimension_numbers<[1], [0], [0], [1], [0, 0, 1, 1], [], []>} : vector<128x128xbf16>, vector<128x128xbf16>, vector<128x128xf32> -> vector<128x128xf32>
    %c0_3 = arith.constant 0 : index
    %c0_4 = arith.constant 0 : index
    %3 = vector.load %arg3[%c0_3, %c0_4] : memref<1x128xf32, #tpu.memory_space<vmem>>, vector<1x128xf32>
    %4 = vector.broadcast %3 : vector<1x128xf32> to vector<128x128xf32>
    %5 = arith.addf %2, %4 : vector<128x128xf32>
    %c0_5 = arith.constant 0 : index
    %c0_6 = arith.constant 0 : index
    %6 = vector.load %arg4[%c0_5, %c0_6] : memref<128x128xf32, #tpu.memory_space<vmem>>, vector<128x128xf32>
    tpu.vector_store %arg4[%c0_5, %c0_6], %5 {strides = array<i32>} : memref<128x128xf32, #tpu.memory_space<vmem>>, vector<128x128xf32>,
    return
  }
  func.func @transform_0(%arg0: i32) -> (i32, i32) {
    %c0_i32 = arith.constant 0 : i32
    %c0_i32_0 = arith.constant 0 : i32
    return %arg0, %c0_i32 : i32, i32
  }
  func.func @transform_1(%arg0: i32) -> (i32, i32) {
    %c0_i32 = arith.constant 0 : i32
    %c0_i32_0 = arith.constant 0 : i32
    %c0_i32_1 = arith.constant 0 : i32
    return %c0_i32, %c0_i32_0 : i32, i32
  }
  func.func @transform_2(%arg0: i32) -> (i32, i32) {
    %c0_i32 = arith.constant 0 : i32
    %c0_i32_0 = arith.constant 0 : i32
    %c0_i32_1 = arith.constant 0 : i32
    return %c0_i32, %c0_i32_0 : i32, i32
  }
  func.func @transform_3(%arg0: i32) -> (i32, i32) {
    %c0_i32 = arith.constant 0 : i32
    %c0_i32_0 = arith.constant 0 : i32
    return %arg0, %c0_i32 : i32, i32
  }
}

module attributes {stable_mosaic.version = 11 : i64} {
  func.func @_xw_kernel(%arg0: i32, %arg1: memref<128x128xbf16, #tpu.memory_space<vmem>>, %arg2: memref<128x128xbf16, #tpu.memory_space<vmem>>, %arg3: memref<128x128xbf16, #tpu.memory_space<vmem>>) attributes {dimension_semantics = [#tpu.dimension_semantics<parallel>], iteration_bounds = array<i64: 1>, scalar_prefetch = 0 : i64, scratch_operands = 0 : i64, tpu.core_type = #tpu.core_type<tc>, window_params = [{transform_indices = @transform_0, window_bounds = array<i64: 128, 128>}, {pipeline_mode = #tpu.pipeline_mode<synchronous>, transform_indices = @transform_1, window_bounds = array<i64: 128, 128>}, {transform_indices = @transform_2, window_bounds = array<i64: 128, 128>}]} {
    %c0 = arith.constant 0 : index
    %c0_0 = arith.constant 0 : index
    %0 = vector.load %arg1[%c0, %c0_0] : memref<128x128xbf16, #tpu.memory_space<vmem>>, vector<128x128xbf16>
    %c0_1 = arith.constant 0 : index
    %c0_2 = arith.constant 0 : index
    %1 = vector.load %arg2[%c0_1, %c0_2] : memref<128x128xbf16, #tpu.memory_space<vmem>>, vector<128x128xbf16>
    %cst = arith.constant dense<0.000000e+00> : vector<128x128xf32>
    %2 = tpu.matmul %0, %1, %cst {dimension_numbers = #tpu.dot_dimension_numbers<[1], [0], [0], [1], [0, 0, 1, 1], [], []>} : vector<128x128xbf16>, vector<128x128xbf16>, vector<128x128xf32> -> vector<128x128xf32>
    %3 = arith.truncf %2 : vector<128x128xf32> to vector<128x128xbf16>
    %c0_3 = arith.constant 0 : index
    %c0_4 = arith.constant 0 : index
    %4 = vector.load %arg3[%c0_3, %c0_4] : memref<128x128xbf16, #tpu.memory_space<vmem>>, vector<128x128xbf16>
    tpu.vector_store %arg3[%c0_3, %c0_4], %3 {strides = array<i32>} : memref<128x128xbf16, #tpu.memory_space<vmem>>, vector<128x128xbf16>,
    return
  }
  func.func @transform_0(%arg0: i32) -> (i32, i32) {
    %c0_i32 = arith.constant 0 : i32
    %c0_i32_0 = arith.constant 0 : i32
    return %arg0, %c0_i32 : i32, i32
  }
  func.func @transform_1(%arg0: i32) -> (i32, i32) {
    %c0_i32 = arith.constant 0 : i32
    %c0_i32_0 = arith.constant 0 : i32
    %c0_i32_1 = arith.constant 0 : i32
    return %c0_i32, %c0_i32_0 : i32, i32
  }
  func.func @transform_2(%arg0: i32) -> (i32, i32) {
    %c0_i32 = arith.constant 0 : i32
    %c0_i32_0 = arith.constant 0 : i32
    return %arg0, %c0_i32 : i32, i32
  }
}

module attributes {stable_mosaic.version = 11 : i64} {
  func.func @_agg_fused_kernel(%arg0: i32, %arg1: memref<128x128xbf16, #tpu.memory_space<vmem>>, %arg2: memref<128x128xbf16, #tpu.memory_space<vmem>>, %arg3: memref<1x128xf32, #tpu.memory_space<vmem>>, %arg4: memref<128x128xbf16, #tpu.memory_space<vmem>>) attributes {dimension_semantics = [#tpu.dimension_semantics<parallel>], iteration_bounds = array<i64: 1>, scalar_prefetch = 0 : i64, scratch_operands = 0 : i64, tpu.core_type = #tpu.core_type<tc>, window_params = [{transform_indices = @transform_0, window_bounds = array<i64: 128, 128>}, {pipeline_mode = #tpu.pipeline_mode<synchronous>, transform_indices = @transform_1, window_bounds = array<i64: 128, 128>}, {pipeline_mode = #tpu.pipeline_mode<synchronous>, transform_indices = @transform_2, window_bounds = array<i64: 1, 128>}, {transform_indices = @transform_3, window_bounds = array<i64: 128, 128>}]} {
    %c0 = arith.constant 0 : index
    %c0_0 = arith.constant 0 : index
    %0 = vector.load %arg1[%c0, %c0_0] : memref<128x128xbf16, #tpu.memory_space<vmem>>, vector<128x128xbf16>
    %c0_1 = arith.constant 0 : index
    %c0_2 = arith.constant 0 : index
    %1 = vector.load %arg2[%c0_1, %c0_2] : memref<128x128xbf16, #tpu.memory_space<vmem>>, vector<128x128xbf16>
    %cst = arith.constant dense<0.000000e+00> : vector<128x128xf32>
    %2 = tpu.matmul %0, %1, %cst {dimension_numbers = #tpu.dot_dimension_numbers<[1], [0], [0], [1], [0, 0, 1, 1], [], []>} : vector<128x128xbf16>, vector<128x128xbf16>, vector<128x128xf32> -> vector<128x128xf32>
    %c0_3 = arith.constant 0 : index
    %c0_4 = arith.constant 0 : index
    %3 = vector.load %arg3[%c0_3, %c0_4] : memref<1x128xf32, #tpu.memory_space<vmem>>, vector<1x128xf32>
    %4 = vector.broadcast %3 : vector<1x128xf32> to vector<128x128xf32>
    %5 = arith.addf %2, %4 : vector<128x128xf32>
    %cst_5 = arith.constant 0.000000e+00 : f32
    %6 = vector.broadcast %cst_5 : f32 to vector<128x128xf32>
    %7 = arith.maximumf %5, %6 : vector<128x128xf32>
    %8 = arith.truncf %7 : vector<128x128xf32> to vector<128x128xbf16>
    %c0_6 = arith.constant 0 : index
    %c0_7 = arith.constant 0 : index
    %9 = vector.load %arg4[%c0_6, %c0_7] : memref<128x128xbf16, #tpu.memory_space<vmem>>, vector<128x128xbf16>
    tpu.vector_store %arg4[%c0_6, %c0_7], %8 {strides = array<i32>} : memref<128x128xbf16, #tpu.memory_space<vmem>>, vector<128x128xbf16>,
    return
  }
  func.func @transform_0(%arg0: i32) -> (i32, i32) {
    %c0_i32 = arith.constant 0 : i32
    %c0_i32_0 = arith.constant 0 : i32
    return %arg0, %c0_i32 : i32, i32
  }
  func.func @transform_1(%arg0: i32) -> (i32, i32) {
    %c0_i32 = arith.constant 0 : i32
    %c0_i32_0 = arith.constant 0 : i32
    %c0_i32_1 = arith.constant 0 : i32
    return %c0_i32, %c0_i32_0 : i32, i32
  }
  func.func @transform_2(%arg0: i32) -> (i32, i32) {
    %c0_i32 = arith.constant 0 : i32
    %c0_i32_0 = arith.constant 0 : i32
    %c0_i32_1 = arith.constant 0 : i32
    return %c0_i32, %c0_i32_0 : i32, i32
  }
  func.func @transform_3(%arg0: i32) -> (i32, i32) {
    %c0_i32 = arith.constant 0 : i32
    %c0_i32_0 = arith.constant 0 : i32
    return %arg0, %c0_i32 : i32, i32
  }
}

</mosaic_0001>

<llo_original>
// kernel: gcn2017_apply_padded.5
$region0: #{gcn2017_apply_padded.5}
  #allocation0 [shape = 'u32[]', space=smem, size = 0x4, offset = 0x4, fixed_abs, tag = 'smem constant byte address 0x4 - core index']
  #allocation1 [shape = 'u32[72,128]{1,0:T(1,128)}', space=vmem, size = 0x9000, scoped, tag = 'internal scratch']
  %s0 = inlined_call_operand.hbm [shape: bf16[128,128], index: 0, kind: input, shape index: {}]
  %s1 = inlined_call_operand.vmem [shape: bf16[128,128], index: 1, kind: input, shape index: {}]
  %s2 = inlined_call_operand.vmem [shape: f32[1,128], index: 2, kind: input, shape index: {}]
  %s3 = inlined_call_operand.vmem [shape: bf16[128,128], index: 3, kind: output, shape index: {}]
  %s4 = sld [smem:[#allocation0]]
  $region26: #{gcn2017_apply_padded.5} parent=0
    _
  %s6 = ssub.s32 1, %s4
  %s7 = scalar_select 0, %s6, %s4
  $region1: #{gcn2017_apply_padded.5} parent=0
    #allocation2 [shape = 'u8[32768]{0}', space=vmem, size = 0x8000, scoped, tag = 'input window, operand 0, single buffered']
    #allocation3 [shape = 's32[1]{0}', space=sflag, size = 0x4, scoped, tag = 'scoped memory for gcn2017_apply_padded.5']
    %8 = vsyncpa [#allocation3], 0
    // Predicated region
    $region2: #{gcn2017_apply_padded.5} parent=1 // pred_check
      _
    $region3: #{gcn2017_apply_padded.5} parent=1 // pred_check_branch
      %10 = sbr.rel (0) target = $region5
    $region4: #{gcn2017_apply_padded.5} parent=1 // pred_region
      %12 = vsyncadd [#allocation3], 0
      %s13 = sshll.u32 %s0, 4
      %s14 = int_to_ptr.hbm [resolvable:$true] %s13
      %s15 = sshll.u32 [#allocation2], 4
      %s16 = int_to_ptr.vmem [resolvable:$true] %s15
      %21 = dma.hbm_to_vmem [thread:$0]  %s14, 1024, %s16, [#allocation3], 64, 64, 4
    $region5: #{gcn2017_apply_padded.5} parent=1 // pred_fallthru
      _
    // Predicated region
    $region6: #{gcn2017_apply_padded.5} parent=1 // pred_check
      _
    $region7: #{gcn2017_apply_padded.5} parent=1 // pred_check_branch
      %23 = sbr.rel (0) target = $region9
    $region8: #{gcn2017_apply_padded.5} parent=1 // pred_region
      _
    $region9: #{gcn2017_apply_padded.5} parent=1 // pred_fallthru
      _
    // Predicated region
    $region10: #{gcn2017_apply_padded.5} parent=1 // pred_check
      _
    $region11: #{gcn2017_apply_padded.5} parent=1 // pred_check_branch
      %25 = sbr.rel (0) target = $region13
    $region12: #{gcn2017_apply_padded.5} parent=1 // pred_region
      _
    $region13: #{gcn2017_apply_padded.5} parent=1 // pred_fallthru
      _
    // Predicated region
    $region14: #{gcn2017_apply_padded.5} parent=1 // pred_check
      _
    $region15: #{gcn2017_apply_padded.5} parent=1 // pred_check_branch
      %27 = sbr.rel (0) target = $region17
    $region16: #{gcn2017_apply_padded.5} parent=1 // pred_region
      %29 = dma.done [#allocation3], 1024
    $region17: #{gcn2017_apply_padded.5} parent=1 // pred_fallthru
      _
    %v30 = vld [vmem:[#allocation2] sm:$0xf]
    %v31 = vld [vmem:[#allocation2 + $0x4] sm:$0xf]
    %v32 = vld [vmem:[#allocation2 + $0x8] sm:$0xf]
    %v33 = vld [vmem:[#allocation2 + $0xc] sm:$0xf]
    %v34 = vld [vmem:[#allocation2 + $0x10] sm:$0xf]
    %v35 = vld [vmem:[#allocation2 + $0x14] sm:$0xf]
    %v36 = vld [vmem:[#allocation2 + $0x18] sm:$0xf]
    %v37 = vld [vmem:[#allocation2 + $0x1c] sm:$0xf]
    %v38 = vld [vmem:[#allocation2 + $0x20] sm:$0xf]
    %v39 = vld [vmem:[#allocation2 + $0x24] sm:$0xf]
    %v40 = vld [vmem:[#allocation2 + $0x28] sm:$0xf]
    %v41 = vld [vmem:[#allocation2 + $0x2c] sm:$0xf]
    %v42 = vld [vmem:[#allocation2 + $0x30] sm:$0xf]
    %v43 = vld [vmem:[#allocation2 + $0x34] sm:$0xf]
    %v44 = vld [vmem:[#allocation2 + $0x38] sm:$0xf]
    %v45 = vld [vmem:[#allocation2 + $0x3c] sm:$0xf]
    %v46 = vld [vmem:[%s1] sm:$0xf]
    %v47 = vld [vmem:[%s1 + $0x4] sm:$0xf]
    %v48 = vld [vmem:[%s1 + $0x8] sm:$0xf]
    %v49 = vld [vmem:[%s1 + $0xc] sm:$0xf]
    %v50 = vld [vmem:[%s1 + $0x10] sm:$0xf]
    %v51 = vld [vmem:[%s1 + $0x14] sm:$0xf]
    %v52 = vld [vmem:[%s1 + $0x18] sm:$0xf]
    %v53 = vld [vmem:[%s1 + $0x1c] sm:$0xf]
    %v54 = vld [vmem:[%s1 + $0x20] sm:$0xf]
    %v55 = vld [vmem:[%s1 + $0x24] sm:$0xf]
    %v56 = vld [vmem:[%s1 + $0x28] sm:$0xf]
    %v57 = vld [vmem:[%s1 + $0x2c] sm:$0xf]
    %v58 = vld [vmem:[%s1 + $0x30] sm:$0xf]
    %v59 = vld [vmem:[%s1 + $0x34] sm:$0xf]
    %v60 = vld [vmem:[%s1 + $0x38] sm:$0xf]
    %v61 = vld [vmem:[%s1 + $0x3c] sm:$0xf]
    %v62 = vld [vmem:[%s2] sm:$0x1]
    %v64 = vperm.slane %v62, 0
    %v82 = vunpack.c.l.b16 %v30
    %v83 = vunpack.c.l.b16 %v31
    %v84 = vunpack.c.l.b16 %v32
    %v85 = vunpack.c.l.b16 %v33
    %v86 = vunpack.c.l.b16 %v34
    %v87 = vunpack.c.l.b16 %v35
    %v88 = vunpack.c.l.b16 %v36
    %v89 = vunpack.c.l.b16 %v37
    %v90 = vunpack.c.l.b16 %v38
    %v91 = vunpack.c.l.b16 %v39
    %v92 = vunpack.c.l.b16 %v40
    %v93 = vunpack.c.l.b16 %v41
    %v94 = vunpack.c.l.b16 %v42
    %v95 = vunpack.c.l.b16 %v43
    %v96 = vunpack.c.l.b16 %v44
    %v97 = vunpack.c.l.b16 %v45
    %v98 = vpack.c.b16 %v83, %v82
    %v99 = vpack.c.b16 %v85, %v84
    %v100 = vpack.c.b16 %v87, %v86
    %v101 = vpack.c.b16 %v89, %v88
    %v102 = vpack.c.b16 %v91, %v90
    %v103 = vpack.c.b16 %v93, %v92
    %v104 = vpack.c.b16 %v95, %v94
    %v105 = vpack.c.b16 %v97, %v96
    %v130 = vunpack.c.l.b16 %v46
    %v131 = vunpack.c.l.b16 %v47
    %v132 = vunpack.c.l.b16 %v48
    %v133 = vunpack.c.l.b16 %v49
    %v134 = vunpack.c.l.b16 %v50
    %v135 = vunpack.c.l.b16 %v51
    %v136 = vunpack.c.l.b16 %v52
    %v137 = vunpack.c.l.b16 %v53
    %v138 = vunpack.c.l.b16 %v54
    %v139 = vunpack.c.l.b16 %v55
    %v140 = vunpack.c.l.b16 %v56
    %v141 = vunpack.c.l.b16 %v57
    %v142 = vunpack.c.l.b16 %v58
    %v143 = vunpack.c.l.b16 %v59
    %v144 = vunpack.c.l.b16 %v60
    %v145 = vunpack.c.l.b16 %v61
    %v146 = vpack.c.b16 %v131, %v130
    %v147 = vpack.c.b16 %v133, %v132
    %v148 = vpack.c.b16 %v135, %v134
    %v149 = vpack.c.b16 %v137, %v136
    %v150 = vpack.c.b16 %v139, %v138
    %v151 = vpack.c.b16 %v141, %v140
    %v152 = vpack.c.b16 %v143, %v142
    %v153 = vpack.c.b16 %v145, %v144
    %162 = vmatpush.bf16.msra.mxu0 %v153
    %163 = vmatpush.bf16.msra.mxu0 %v152
    %164 = vmatpush.bf16.msra.mxu0 %v151
    %165 = vmatpush.bf16.msra.mxu0 %v150
    %166 = vmatpush.bf16.msra.mxu0 %v149
    %167 = vmatpush.bf16.msra.mxu0 %v148
    %168 = vmatpush.bf16.msra.mxu0 %v147
    %169 = vmatpush.bf16.msra.mxu0 %v146
    %170 = vmatmul.bf16.gmra.mxu0 %v98
    %v171 = vpop.f32.mrf.mxu0
    %v172 = vadd.f32 %v64, %v171
    %v173 = vpop.f32.mrf.mxu0
    %v174 = vadd.f32 %v64, %v173
    %175 = vmatmul.bf16.gmra.mxu0 %v99
    %v176 = vpop.f32.mrf.mxu0
    %v177 = vadd.f32 %v64, %v176
    %v178 = vpop.f32.mrf.mxu0
    %v179 = vadd.f32 %v64, %v178
    %180 = vmatmul.bf16.gmra.mxu0 %v100
    %v181 = vpop.f32.mrf.mxu0
    %v182 = vadd.f32 %v64, %v181
    %v183 = vpop.f32.mrf.mxu0
    %v184 = vadd.f32 %v64, %v183
    %185 = vmatmul.bf16.gmra.mxu0 %v101
    %v186 = vpop.f32.mrf.mxu0
    %v187 = vadd.f32 %v64, %v186
    %v188 = vpop.f32.mrf.mxu0
    %v189 = vadd.f32 %v64, %v188
    %190 = vmatmul.bf16.gmra.mxu0 %v102
    %v191 = vpop.f32.mrf.mxu0
    %v192 = vadd.f32 %v64, %v191
    %v193 = vpop.f32.mrf.mxu0
    %v194 = vadd.f32 %v64, %v193
    %195 = vmatmul.bf16.gmra.mxu0 %v103
    %v196 = vpop.f32.mrf.mxu0
    %v197 = vadd.f32 %v64, %v196
    %v198 = vpop.f32.mrf.mxu0
    %v199 = vadd.f32 %v64, %v198
    %200 = vmatmul.bf16.gmra.mxu0 %v104
    %v201 = vpop.f32.mrf.mxu0
    %v202 = vadd.f32 %v64, %v201
    %v203 = vpop.f32.mrf.mxu0
    %v204 = vadd.f32 %v64, %v203
    %205 = vmatmul.bf16.gmra.mxu0 %v105
    %v206 = vpop.f32.mrf.mxu0
    %v207 = vadd.f32 %v64, %v206
    %v208 = vpop.f32.mrf.mxu0
    %v209 = vadd.f32 %v64, %v208
    %210 = vdwg.mxu0
    %v211 = vmax.f32 %v172, 0.0
    %v212 = vmax.f32 %v174, 0.0
    %v213 = vmax.f32 %v177, 0.0
    %v214 = vmax.f32 %v179, 0.0
    %v215 = vmax.f32 %v182, 0.0
    %v216 = vmax.f32 %v184, 0.0
    %v217 = vmax.f32 %v187, 0.0
    %v218 = vmax.f32 %v189, 0.0
    %v219 = vmax.f32 %v192, 0.0
    %v220 = vmax.f32 %v194, 0.0
    %v221 = vmax.f32 %v197, 0.0
    %v222 = vmax.f32 %v199, 0.0
    %v223 = vmax.f32 %v202, 0.0
    %v224 = vmax.f32 %v204, 0.0
    %v225 = vmax.f32 %v207, 0.0
    %v226 = vmax.f32 %v209, 0.0
    %v227 = vpack.c.bf16 %v211, %v211
    %v228 = vpack.c.bf16 %v212, %v212
    %v229 = vpack.c.bf16 %v213, %v213
    %v230 = vpack.c.bf16 %v214, %v214
    %v231 = vpack.c.bf16 %v215, %v215
    %v232 = vpack.c.bf16 %v216, %v216
    %v233 = vpack.c.bf16 %v217, %v217
    %v234 = vpack.c.bf16 %v218, %v218
    %v235 = vpack.c.bf16 %v219, %v219
    %v236 = vpack.c.bf16 %v220, %v220
    %v237 = vpack.c.bf16 %v221, %v221
    %v238 = vpack.c.bf16 %v222, %v222
    %v239 = vpack.c.bf16 %v223, %v223
    %v240 = vpack.c.bf16 %v224, %v224
    %v241 = vpack.c.bf16 %v225, %v225
    %v242 = vpack.c.bf16 %v226, %v226
    %243 = vst [vmem:[%s3] sm:$0xf] %v227
    %244 = vst [vmem:[%s3 + $0x4] sm:$0xf] %v228
    %245 = vst [vmem:[%s3 + $0x8] sm:$0xf] %v229
    %246 = vst [vmem:[%s3 + $0xc] sm:$0xf] %v230
    %247 = vst [vmem:[%s3 + $0x10] sm:$0xf] %v231
    %248 = vst [vmem:[%s3 + $0x14] sm:$0xf] %v232
    %249 = vst [vmem:[%s3 + $0x18] sm:$0xf] %v233
    %250 = vst [vmem:[%s3 + $0x1c] sm:$0xf] %v234
    %251 = vst [vmem:[%s3 + $0x20] sm:$0xf] %v235
    %252 = vst [vmem:[%s3 + $0x24] sm:$0xf] %v236
    %253 = vst [vmem:[%s3 + $0x28] sm:$0xf] %v237
    %254 = vst [vmem:[%s3 + $0x2c] sm:$0xf] %v238
    %255 = vst [vmem:[%s3 + $0x30] sm:$0xf] %v239
    %256 = vst [vmem:[%s3 + $0x34] sm:$0xf] %v240
    %257 = vst [vmem:[%s3 + $0x38] sm:$0xf] %v241
    %258 = vst [vmem:[%s3 + $0x3c] sm:$0xf] %v242
    // Predicated region
    $region18: #{gcn2017_apply_padded.5} parent=1 // pred_check
      _
    $region19: #{gcn2017_apply_padded.5} parent=1 // pred_check_branch
      %260 = sbr.rel (0) target = $region21
    $region20: #{gcn2017_apply_padded.5} parent=1 // pred_region
      _
    $region21: #{gcn2017_apply_padded.5} parent=1 // pred_fallthru
      _
    // Predicated region
    $region22: #{gcn2017_apply_padded.5} parent=1 // pred_check
      _
    $region23: #{gcn2017_apply_padded.5} parent=1 // pred_check_branch
      %262 = sbr.rel (0) target = $region25
    $region24: #{gcn2017_apply_padded.5} parent=1 // pred_region
      _
    $region25: #{gcn2017_apply_padded.5} parent=1 // pred_fallthru
      _
    %263 = vsyncpa [#allocation3], 1

// kernel: gcn2017_apply_padded.6
$region0: #{gcn2017_apply_padded.6}
  #allocation0 [shape = 'u32[]', space=smem, size = 0x4, offset = 0x4, fixed_abs, tag = 'smem constant byte address 0x4 - core index']
  #allocation1 [shape = 'u32[72,128]{1,0:T(1,128)}', space=vmem, size = 0x9000, scoped, tag = 'internal scratch']
  %s0 = inlined_call_operand.vmem [shape: bf16[128,128], index: 0, kind: input, shape index: {}]
  %s1 = inlined_call_operand.vmem [shape: bf16[128,128], index: 1, kind: input, shape index: {}]
  %s2 = inlined_call_operand.vmem [shape: bf16[128,128], index: 2, kind: output, shape index: {}]
  %s3 = sld [smem:[#allocation0]]
  $region18: #{gcn2017_apply_padded.6} parent=0
    _
  %s5 = ssub.s32 1, %s3
  %s6 = scalar_select 0, %s5, %s3
  // Predicated region
  $region2: #{gcn2017_apply_padded.6} parent=0 // pred_check
    _
  $region3: #{gcn2017_apply_padded.6} parent=0 // pred_check_branch
    %8 = sbr.rel (0) target = $region5
  $region4: #{gcn2017_apply_padded.6} parent=0 // pred_region
    _
  $region5: #{gcn2017_apply_padded.6} parent=0 // pred_fallthru
    _
  // Predicated region
  $region6: #{gcn2017_apply_padded.6} parent=0 // pred_check
    _
  $region7: #{gcn2017_apply_padded.6} parent=0 // pred_check_branch
    %10 = sbr.rel (0) target = $region9
  $region8: #{gcn2017_apply_padded.6} parent=0 // pred_region
    _
  $region9: #{gcn2017_apply_padded.6} parent=0 // pred_fallthru
    _
  %v11 = vld [vmem:[%s0] sm:$0xf]
  %v12 = vld [vmem:[%s0 + $0x4] sm:$0xf]
  %v13 = vld [vmem:[%s0 + $0x8] sm:$0xf]
  %v14 = vld [vmem:[%s0 + $0xc] sm:$0xf]
  %v15 = vld [vmem:[%s0 + $0x10] sm:$0xf]
  %v16 = vld [vmem:[%s0 + $0x14] sm:$0xf]
  %v17 = vld [vmem:[%s0 + $0x18] sm:$0xf]
  %v18 = vld [vmem:[%s0 + $0x1c] sm:$0xf]
  %v19 = vld [vmem:[%s0 + $0x20] sm:$0xf]
  %v20 = vld [vmem:[%s0 + $0x24] sm:$0xf]
  %v21 = vld [vmem:[%s0 + $0x28] sm:$0xf]
  %v22 = vld [vmem:[%s0 + $0x2c] sm:$0xf]
  %v23 = vld [vmem:[%s0 + $0x30] sm:$0xf]
  %v24 = vld [vmem:[%s0 + $0x34] sm:$0xf]
  %v25 = vld [vmem:[%s0 + $0x38] sm:$0xf]
  %v26 = vld [vmem:[%s0 + $0x3c] sm:$0xf]
  %v27 = vld [vmem:[%s1] sm:$0xf]
  %v28 = vld [vmem:[%s1 + $0x4] sm:$0xf]
  %v29 = vld [vmem:[%s1 + $0x8] sm:$0xf]
  %v30 = vld [vmem:[%s1 + $0xc] sm:$0xf]
  %v31 = vld [vmem:[%s1 + $0x10] sm:$0xf]
  %v32 = vld [vmem:[%s1 + $0x14] sm:$0xf]
  %v33 = vld [vmem:[%s1 + $0x18] sm:$0xf]
  %v34 = vld [vmem:[%s1 + $0x1c] sm:$0xf]
  %v35 = vld [vmem:[%s1 + $0x20] sm:$0xf]
  %v36 = vld [vmem:[%s1 + $0x24] sm:$0xf]
  %v37 = vld [vmem:[%s1 + $0x28] sm:$0xf]
  %v38 = vld [vmem:[%s1 + $0x2c] sm:$0xf]
  %v39 = vld [vmem:[%s1 + $0x30] sm:$0xf]
  %v40 = vld [vmem:[%s1 + $0x34] sm:$0xf]
  %v41 = vld [vmem:[%s1 + $0x38] sm:$0xf]
  %v42 = vld [vmem:[%s1 + $0x3c] sm:$0xf]
  %v59 = vunpack.c.l.b16 %v11
  %v60 = vunpack.c.l.b16 %v12
  %v61 = vunpack.c.l.b16 %v13
  %v62 = vunpack.c.l.b16 %v14
  %v63 = vunpack.c.l.b16 %v15
  %v64 = vunpack.c.l.b16 %v16
  %v65 = vunpack.c.l.b16 %v17
  %v66 = vunpack.c.l.b16 %v18
  %v67 = vunpack.c.l.b16 %v19
  %v68 = vunpack.c.l.b16 %v20
  %v69 = vunpack.c.l.b16 %v21
  %v70 = vunpack.c.l.b16 %v22
  %v71 = vunpack.c.l.b16 %v23
  %v72 = vunpack.c.l.b16 %v24
  %v73 = vunpack.c.l.b16 %v25
  %v74 = vunpack.c.l.b16 %v26
  %v75 = vpack.c.b16 %v60, %v59
  %v76 = vpack.c.b16 %v62, %v61
  %v77 = vpack.c.b16 %v64, %v63
  %v78 = vpack.c.b16 %v66, %v65
  %v79 = vpack.c.b16 %v68, %v67
  %v80 = vpack.c.b16 %v70, %v69
  %v81 = vpack.c.b16 %v72, %v71
  %v82 = vpack.c.b16 %v74, %v73
  %v107 = vunpack.c.l.b16 %v27
  %v108 = vunpack.c.l.b16 %v28
  %v109 = vunpack.c.l.b16 %v29
  %v110 = vunpack.c.l.b16 %v30
  %v111 = vunpack.c.l.b16 %v31
  %v112 = vunpack.c.l.b16 %v32
  %v113 = vunpack.c.l.b16 %v33
  %v114 = vunpack.c.l.b16 %v34
  %v115 = vunpack.c.l.b16 %v35
  %v116 = vunpack.c.l.b16 %v36
  %v117 = vunpack.c.l.b16 %v37
  %v118 = vunpack.c.l.b16 %v38
  %v119 = vunpack.c.l.b16 %v39
  %v120 = vunpack.c.l.b16 %v40
  %v121 = vunpack.c.l.b16 %v41
  %v122 = vunpack.c.l.b16 %v42
  %v123 = vpack.c.b16 %v108, %v107
  %v124 = vpack.c.b16 %v110, %v109
  %v125 = vpack.c.b16 %v112, %v111
  %v126 = vpack.c.b16 %v114, %v113
  %v127 = vpack.c.b16 %v116, %v115
  %v128 = vpack.c.b16 %v118, %v117
  %v129 = vpack.c.b16 %v120, %v119
  %v130 = vpack.c.b16 %v122, %v121
  %139 = vmatpush.bf16.msra.mxu0 %v130
  %140 = vmatpush.bf16.msra.mxu0 %v129
  %141 = vmatpush.bf16.msra.mxu0 %v128
  %142 = vmatpush.bf16.msra.mxu0 %v127
  %143 = vmatpush.bf16.msra.mxu0 %v126
  %144 = vmatpush.bf16.msra.mxu0 %v125
  %145 = vmatpush.bf16.msra.mxu0 %v124
  %146 = vmatpush.bf16.msra.mxu0 %v123
  %147 = vmatmul.bf16.gmra.mxu0 %v75
  %v148 = vpop.f32.mrf.mxu0
  %v149 = vadd.f32 0.0, %v148
  %v150 = vpop.f32.mrf.mxu0
  %v151 = vadd.f32 0.0, %v150
  %152 = vmatmul.bf16.gmra.mxu0 %v76
  %v153 = vpop.f32.mrf.mxu0
  %v154 = vadd.f32 0.0, %v153
  %v155 = vpop.f32.mrf.mxu0
  %v156 = vadd.f32 0.0, %v155
  %157 = vmatmul.bf16.gmra.mxu0 %v77
  %v158 = vpop.f32.mrf.mxu0
  %v159 = vadd.f32 0.0, %v158
  %v160 = vpop.f32.mrf.mxu0
  %v161 = vadd.f32 0.0, %v160
  %162 = vmatmul.bf16.gmra.mxu0 %v78
  %v163 = vpop.f32.mrf.mxu0
  %v164 = vadd.f32 0.0, %v163
  %v165 = vpop.f32.mrf.mxu0
  %v166 = vadd.f32 0.0, %v165
  %167 = vmatmul.bf16.gmra.mxu0 %v79
  %v168 = vpop.f32.mrf.mxu0
  %v169 = vadd.f32 0.0, %v168
  %v170 = vpop.f32.mrf.mxu0
  %v171 = vadd.f32 0.0, %v170
  %172 = vmatmul.bf16.gmra.mxu0 %v80
  %v173 = vpop.f32.mrf.mxu0
  %v174 = vadd.f32 0.0, %v173
  %v175 = vpop.f32.mrf.mxu0
  %v176 = vadd.f32 0.0, %v175
  %177 = vmatmul.bf16.gmra.mxu0 %v81
  %v178 = vpop.f32.mrf.mxu0
  %v179 = vadd.f32 0.0, %v178
  %v180 = vpop.f32.mrf.mxu0
  %v181 = vadd.f32 0.0, %v180
  %182 = vmatmul.bf16.gmra.mxu0 %v82
  %v183 = vpop.f32.mrf.mxu0
  %v184 = vadd.f32 0.0, %v183
  %v185 = vpop.f32.mrf.mxu0
  %v186 = vadd.f32 0.0, %v185
  %187 = vdwg.mxu0
  %v188 = vpack.c.bf16 %v149, %v149
  %v189 = vpack.c.bf16 %v151, %v151
  %v190 = vpack.c.bf16 %v154, %v154
  %v191 = vpack.c.bf16 %v156, %v156
  %v192 = vpack.c.bf16 %v159, %v159
  %v193 = vpack.c.bf16 %v161, %v161
  %v194 = vpack.c.bf16 %v164, %v164
  %v195 = vpack.c.bf16 %v166, %v166
  %v196 = vpack.c.bf16 %v169, %v169
  %v197 = vpack.c.bf16 %v171, %v171
  %v198 = vpack.c.bf16 %v174, %v174
  %v199 = vpack.c.bf16 %v176, %v176
  %v200 = vpack.c.bf16 %v179, %v179
  %v201 = vpack.c.bf16 %v181, %v181
  %v202 = vpack.c.bf16 %v184, %v184
  %v203 = vpack.c.bf16 %v186, %v186
  %204 = vst [vmem:[%s2] sm:$0xf] %v188
  %205 = vst [vmem:[%s2 + $0x4] sm:$0xf] %v189
  %206 = vst [vmem:[%s2 + $0x8] sm:$0xf] %v190
  %207 = vst [vmem:[%s2 + $0xc] sm:$0xf] %v191
  %208 = vst [vmem:[%s2 + $0x10] sm:$0xf] %v192
  %209 = vst [vmem:[%s2 + $0x14] sm:$0xf] %v193
  %210 = vst [vmem:[%s2 + $0x18] sm:$0xf] %v194
  %211 = vst [vmem:[%s2 + $0x1c] sm:$0xf] %v195
  %212 = vst [vmem:[%s2 + $0x20] sm:$0xf] %v196
  %213 = vst [vmem:[%s2 + $0x24] sm:$0xf] %v197
  %214 = vst [vmem:[%s2 + $0x28] sm:$0xf] %v198
  %215 = vst [vmem:[%s2 + $0x2c] sm:$0xf] %v199
  %216 = vst [vmem:[%s2 + $0x30] sm:$0xf] %v200
  %217 = vst [vmem:[%s2 + $0x34] sm:$0xf] %v201
  %218 = vst [vmem:[%s2 + $0x38] sm:$0xf] %v202
  %219 = vst [vmem:[%s2 + $0x3c] sm:$0xf] %v203
  // Predicated region
  $region10: #{gcn2017_apply_padded.6} parent=0 // pred_check
    _
  $region11: #{gcn2017_apply_padded.6} parent=0 // pred_check_branch
    %221 = sbr.rel (0) target = $region13
  $region12: #{gcn2017_apply_padded.6} parent=0 // pred_region
    _
  $region13: #{gcn2017_apply_padded.6} parent=0 // pred_fallthru
    _
  // Predicated region
  $region14: #{gcn2017_apply_padded.6} parent=0 // pred_check
    _
  $region15: #{gcn2017_apply_padded.6} parent=0 // pred_check_branch
    %223 = sbr.rel (0) target = $region17
  $region16: #{gcn2017_apply_padded.6} parent=0 // pred_region
    _
  $region17: #{gcn2017_apply_padded.6} parent=0 // pred_fallthru
    _

// kernel: gcn2017_apply_padded.4
$region0: #{gcn2017_apply_padded.4}
  #allocation0 [shape = 'u32[]', space=smem, size = 0x4, offset = 0x4, fixed_abs, tag = 'smem constant byte address 0x4 - core index']
  #allocation1 [shape = 'u32[72,128]{1,0:T(1,128)}', space=vmem, size = 0x9000, scoped, tag = 'internal scratch']
  %s0 = inlined_call_operand.hbm [shape: bf16[128,128], index: 0, kind: input, shape index: {}]
  %s1 = inlined_call_operand.hbm [shape: bf16[128,128], index: 1, kind: input, shape index: {}]
  %s2 = inlined_call_operand.vmem [shape: bf16[128,128], index: 2, kind: output, shape index: {}]
  %s3 = sld [smem:[#allocation0]]
  $region26: #{gcn2017_apply_padded.4} parent=0
    _
  %s5 = ssub.s32 1, %s3
  %s6 = scalar_select 0, %s5, %s3
  $region1: #{gcn2017_apply_padded.4} parent=0
    #allocation2 [shape = 'u8[32768]{0}', space=vmem, size = 0x8000, scoped, tag = 'input window, operand 0, single buffered']
    #allocation3 [shape = 's32[1]{0}', space=sflag, size = 0x4, scoped, tag = 'scoped memory for gcn2017_apply_padded.4']
    #allocation4 [shape = 'u8[32768]{0}', space=vmem, size = 0x8000, scoped, tag = 'input window, operand 1, single buffered']
    #allocation5 [shape = 's32[1]{0}', space=sflag, size = 0x4, scoped, tag = 'scoped memory for gcn2017_apply_padded.4']
    %7 = vsyncpa [#allocation3], 0
    %8 = vsyncpa [#allocation5], 0
    // Predicated region
    $region2: #{gcn2017_apply_padded.4} parent=1 // pred_check
      _
    $region3: #{gcn2017_apply_padded.4} parent=1 // pred_check_branch
      %10 = sbr.rel (0) target = $region5
    $region4: #{gcn2017_apply_padded.4} parent=1 // pred_region
      %12 = vsyncadd [#allocation3], 0
      %s13 = sshll.u32 %s0, 4
      %s14 = int_to_ptr.hbm [resolvable:$true] %s13
      %s15 = sshll.u32 [#allocation2], 4
      %s16 = int_to_ptr.vmem [resolvable:$true] %s15
      %21 = dma.hbm_to_vmem [thread:$0]  %s14, 1024, %s16, [#allocation3], 64, 64, 4
    $region5: #{gcn2017_apply_padded.4} parent=1 // pred_fallthru
      _
    // Predicated region
    $region6: #{gcn2017_apply_padded.4} parent=1 // pred_check
      _
    $region7: #{gcn2017_apply_padded.4} parent=1 // pred_check_branch
      %23 = sbr.rel (0) target = $region9
    $region8: #{gcn2017_apply_padded.4} parent=1 // pred_region
      %25 = vsyncadd [#allocation5], 0
      %s26 = sshll.u32 %s1, 4
      %s27 = int_to_ptr.hbm [resolvable:$true] %s26
      %s28 = sshll.u32 [#allocation4], 4
      %s29 = int_to_ptr.vmem [resolvable:$true] %s28
      %34 = dma.hbm_to_vmem [thread:$0]  %s27, 1024, %s29, [#allocation5], 64, 64, 4
    $region9: #{gcn2017_apply_padded.4} parent=1 // pred_fallthru
      _
    // Predicated region
    $region10: #{gcn2017_apply_padded.4} parent=1 // pred_check
      _
    $region11: #{gcn2017_apply_padded.4} parent=1 // pred_check_branch
      %36 = sbr.rel (0) target = $region13
    $region12: #{gcn2017_apply_padded.4} parent=1 // pred_region
      %38 = dma.done [#allocation3], 1024
    $region13: #{gcn2017_apply_padded.4} parent=1 // pred_fallthru
      _
    // Predicated region
    $region14: #{gcn2017_apply_padded.4} parent=1 // pred_check
      _
    $region15: #{gcn2017_apply_padded.4} parent=1 // pred_check_branch
      %40 = sbr.rel (0) target = $region17
    $region16: #{gcn2017_apply_padded.4} parent=1 // pred_region
      %42 = dma.done [#allocation5], 1024
    $region17: #{gcn2017_apply_padded.4} parent=1 // pred_fallthru
      _
    %v43 = vld [vmem:[#allocation2] sm:$0xf]
    %v44 = vld [vmem:[#allocation2 + $0x4] sm:$0xf]
    %v45 = vld [vmem:[#allocation2 + $0x8] sm:$0xf]
    %v46 = vld [vmem:[#allocation2 + $0xc] sm:$0xf]
    %v47 = vld [vmem:[#allocation2 + $0x10] sm:$0xf]
    %v48 = vld [vmem:[#allocation2 + $0x14] sm:$0xf]
    %v49 = vld [vmem:[#allocation2 + $0x18] sm:$0xf]
    %v50 = vld [vmem:[#allocation2 + $0x1c] sm:$0xf]
    %v51 = vld [vmem:[#allocation2 + $0x20] sm:$0xf]
    %v52 = vld [vmem:[#allocation2 + $0x24] sm:$0xf]
    %v53 = vld [vmem:[#allocation2 + $0x28] sm:$0xf]
    %v54 = vld [vmem:[#allocation2 + $0x2c] sm:$0xf]
    %v55 = vld [vmem:[#allocation2 + $0x30] sm:$0xf]
    %v56 = vld [vmem:[#allocation2 + $0x34] sm:$0xf]
    %v57 = vld [vmem:[#allocation2 + $0x38] sm:$0xf]
    %v58 = vld [vmem:[#allocation2 + $0x3c] sm:$0xf]
    %v59 = vld [vmem:[#allocation4] sm:$0xf]
    %v60 = vld [vmem:[#allocation4 + $0x4] sm:$0xf]
    %v61 = vld [vmem:[#allocation4 + $0x8] sm:$0xf]
    %v62 = vld [vmem:[#allocation4 + $0xc] sm:$0xf]
    %v63 = vld [vmem:[#allocation4 + $0x10] sm:$0xf]
    %v64 = vld [vmem:[#allocation4 + $0x14] sm:$0xf]
    %v65 = vld [vmem:[#allocation4 + $0x18] sm:$0xf]
    %v66 = vld [vmem:[#allocation4 + $0x1c] sm:$0xf]
    %v67 = vld [vmem:[#allocation4 + $0x20] sm:$0xf]
    %v68 = vld [vmem:[#allocation4 + $0x24] sm:$0xf]
    %v69 = vld [vmem:[#allocation4 + $0x28] sm:$0xf]
    %v70 = vld [vmem:[#allocation4 + $0x2c] sm:$0xf]
    %v71 = vld [vmem:[#allocation4 + $0x30] sm:$0xf]
    %v72 = vld [vmem:[#allocation4 + $0x34] sm:$0xf]
    %v73 = vld [vmem:[#allocation4 + $0x38] sm:$0xf]
    %v74 = vld [vmem:[#allocation4 + $0x3c] sm:$0xf]
    %v91 = vunpack.c.l.b16 %v43
    %v92 = vunpack.c.l.b16 %v44
    %v93 = vunpack.c.l.b16 %v45
    %v94 = vunpack.c.l.b16 %v46
    %v95 = vunpack.c.l.b16 %v47
    %v96 = vunpack.c.l.b16 %v48
    %v97 = vunpack.c.l.b16 %v49
    %v98 = vunpack.c.l.b16 %v50
    %v99 = vunpack.c.l.b16 %v51
    %v100 = vunpack.c.l.b16 %v52
    %v101 = vunpack.c.l.b16 %v53
    %v102 = vunpack.c.l.b16 %v54
    %v103 = vunpack.c.l.b16 %v55
    %v104 = vunpack.c.l.b16 %v56
    %v105 = vunpack.c.l.b16 %v57
    %v106 = vunpack.c.l.b16 %v58
    %v107 = vpack.c.b16 %v92, %v91
    %v108 = vpack.c.b16 %v94, %v93
    %v109 = vpack.c.b16 %v96, %v95
    %v110 = vpack.c.b16 %v98, %v97
    %v111 = vpack.c.b16 %v100, %v99
    %v112 = vpack.c.b16 %v102, %v101
    %v113 = vpack.c.b16 %v104, %v103
    %v114 = vpack.c.b16 %v106, %v105
    %v139 = vunpack.c.l.b16 %v59
    %v140 = vunpack.c.l.b16 %v60
    %v141 = vunpack.c.l.b16 %v61
    %v142 = vunpack.c.l.b16 %v62
    %v143 = vunpack.c.l.b16 %v63
    %v144 = vunpack.c.l.b16 %v64
    %v145 = vunpack.c.l.b16 %v65
    %v146 = vunpack.c.l.b16 %v66
    %v147 = vunpack.c.l.b16 %v67
    %v148 = vunpack.c.l.b16 %v68
    %v149 = vunpack.c.l.b16 %v69
    %v150 = vunpack.c.l.b16 %v70
    %v151 = vunpack.c.l.b16 %v71
    %v152 = vunpack.c.l.b16 %v72
    %v153 = vunpack.c.l.b16 %v73
    %v154 = vunpack.c.l.b16 %v74
    %v155 = vpack.c.b16 %v140, %v139
    %v156 = vpack.c.b16 %v142, %v141
    %v157 = vpack.c.b16 %v144, %v143
    %v158 = vpack.c.b16 %v146, %v145
    %v159 = vpack.c.b16 %v148, %v147
    %v160 = vpack.c.b16 %v150, %v149
    %v161 = vpack.c.b16 %v152, %v151
    %v162 = vpack.c.b16 %v154, %v153
    %171 = vmatpush.bf16.msra.mxu0 %v162
    %172 = vmatpush.bf16.msra.mxu0 %v161
    %173 = vmatpush.bf16.msra.mxu0 %v160
    %174 = vmatpush.bf16.msra.mxu0 %v159
    %175 = vmatpush.bf16.msra.mxu0 %v158
    %176 = vmatpush.bf16.msra.mxu0 %v157
    %177 = vmatpush.bf16.msra.mxu0 %v156
    %178 = vmatpush.bf16.msra.mxu0 %v155
    %179 = vmatmul.bf16.gmra.mxu0 %v107
    %v180 = vpop.f32.mrf.mxu0
    %v181 = vadd.f32 0.0, %v180
    %v182 = vpop.f32.mrf.mxu0
    %v183 = vadd.f32 0.0, %v182
    %184 = vmatmul.bf16.gmra.mxu0 %v108
    %v185 = vpop.f32.mrf.mxu0
    %v186 = vadd.f32 0.0, %v185
    %v187 = vpop.f32.mrf.mxu0
    %v188 = vadd.f32 0.0, %v187
    %189 = vmatmul.bf16.gmra.mxu0 %v109
    %v190 = vpop.f32.mrf.mxu0
    %v191 = vadd.f32 0.0, %v190
    %v192 = vpop.f32.mrf.mxu0
    %v193 = vadd.f32 0.0, %v192
    %194 = vmatmul.bf16.gmra.mxu0 %v110
    %v195 = vpop.f32.mrf.mxu0
    %v196 = vadd.f32 0.0, %v195
    %v197 = vpop.f32.mrf.mxu0
    %v198 = vadd.f32 0.0, %v197
    %199 = vmatmul.bf16.gmra.mxu0 %v111
    %v200 = vpop.f32.mrf.mxu0
    %v201 = vadd.f32 0.0, %v200
    %v202 = vpop.f32.mrf.mxu0
    %v203 = vadd.f32 0.0, %v202
    %204 = vmatmul.bf16.gmra.mxu0 %v112
    %v205 = vpop.f32.mrf.mxu0
    %v206 = vadd.f32 0.0, %v205
    %v207 = vpop.f32.mrf.mxu0
    %v208 = vadd.f32 0.0, %v207
    %209 = vmatmul.bf16.gmra.mxu0 %v113
    %v210 = vpop.f32.mrf.mxu0
    %v211 = vadd.f32 0.0, %v210
    %v212 = vpop.f32.mrf.mxu0
    %v213 = vadd.f32 0.0, %v212
    %214 = vmatmul.bf16.gmra.mxu0 %v114
    %v215 = vpop.f32.mrf.mxu0
    %v216 = vadd.f32 0.0, %v215
    %v217 = vpop.f32.mrf.mxu0
    %v218 = vadd.f32 0.0, %v217
    %219 = vdwg.mxu0
    %v220 = vpack.c.bf16 %v181, %v181
    %v221 = vpack.c.bf16 %v183, %v183
    %v222 = vpack.c.bf16 %v186, %v186
    %v223 = vpack.c.bf16 %v188, %v188
    %v224 = vpack.c.bf16 %v191, %v191
    %v225 = vpack.c.bf16 %v193, %v193
    %v226 = vpack.c.bf16 %v196, %v196
    %v227 = vpack.c.bf16 %v198, %v198
    %v228 = vpack.c.bf16 %v201, %v201
    %v229 = vpack.c.bf16 %v203, %v203
    %v230 = vpack.c.bf16 %v206, %v206
    %v231 = vpack.c.bf16 %v208, %v208
    %v232 = vpack.c.bf16 %v211, %v211
    %v233 = vpack.c.bf16 %v213, %v213
    %v234 = vpack.c.bf16 %v216, %v216
    %v235 = vpack.c.bf16 %v218, %v218
    %236 = vst [vmem:[%s2] sm:$0xf] %v220
    %237 = vst [vmem:[%s2 + $0x4] sm:$0xf] %v221
    %238 = vst [vmem:[%s2 + $0x8] sm:$0xf] %v222
    %239 = vst [vmem:[%s2 + $0xc] sm:$0xf] %v223
    %240 = vst [vmem:[%s2 + $0x10] sm:$0xf] %v224
    %241 = vst [vmem:[%s2 + $0x14] sm:$0xf] %v225
    %242 = vst [vmem:[%s2 + $0x18] sm:$0xf] %v226
    %243 = vst [vmem:[%s2 + $0x1c] sm:$0xf] %v227
    %244 = vst [vmem:[%s2 + $0x20] sm:$0xf] %v228
    %245 = vst [vmem:[%s2 + $0x24] sm:$0xf] %v229
    %246 = vst [vmem:[%s2 + $0x28] sm:$0xf] %v230
    %247 = vst [vmem:[%s2 + $0x2c] sm:$0xf] %v231
    %248 = vst [vmem:[%s2 + $0x30] sm:$0xf] %v232
    %249 = vst [vmem:[%s2 + $0x34] sm:$0xf] %v233
    %250 = vst [vmem:[%s2 + $0x38] sm:$0xf] %v234
    %251 = vst [vmem:[%s2 + $0x3c] sm:$0xf] %v235
    // Predicated region
    $region18: #{gcn2017_apply_padded.4} parent=1 // pred_check
      _
    $region19: #{gcn2017_apply_padded.4} parent=1 // pred_check_branch
      %253 = sbr.rel (0) target = $region21
    $region20: #{gcn2017_apply_padded.4} parent=1 // pred_region
      _
    $region21: #{gcn2017_apply_padded.4} parent=1 // pred_fallthru
      _
    // Predicated region
    $region22: #{gcn2017_apply_padded.4} parent=1 // pred_check
      _
    $region23: #{gcn2017_apply_padded.4} parent=1 // pred_check_branch
      %255 = sbr.rel (0) target = $region25
    $region24: #{gcn2017_apply_padded.4} parent=1 // pred_region
      _
    $region25: #{gcn2017_apply_padded.4} parent=1 // pred_fallthru
      _
    %256 = vsyncpa [#allocation3], 1
    %257 = vsyncpa [#allocation5], 1

// kernel: gcn2017_apply_padded.7
$region0: #{gcn2017_apply_padded.7}
  #allocation0 [shape = 'u32[]', space=smem, size = 0x4, offset = 0x4, fixed_abs, tag = 'smem constant byte address 0x4 - core index']
  #allocation1 [shape = 'u32[72,128]{1,0:T(1,128)}', space=vmem, size = 0x9000, scoped, tag = 'internal scratch']
  %s0 = inlined_call_operand.vmem [shape: bf16[128,128], index: 0, kind: input, shape index: {}]
  %s1 = inlined_call_operand.vmem [shape: bf16[128,128], index: 1, kind: input, shape index: {}]
  %s2 = inlined_call_operand.vmem [shape: f32[1,128], index: 2, kind: input, shape index: {}]
  %s3 = inlined_call_operand.vmem [shape: f32[128,128], index: 3, kind: output, shape index: {}]
  %s4 = sld [smem:[#allocation0]]
  $region22: #{gcn2017_apply_padded.7} parent=0
    _
  %s6 = ssub.s32 1, %s4
  %s7 = scalar_select 0, %s6, %s4
  // Predicated region
  $region2: #{gcn2017_apply_padded.7} parent=0 // pred_check
    _
  $region3: #{gcn2017_apply_padded.7} parent=0 // pred_check_branch
    %9 = sbr.rel (0) target = $region5
  $region4: #{gcn2017_apply_padded.7} parent=0 // pred_region
    _
  $region5: #{gcn2017_apply_padded.7} parent=0 // pred_fallthru
    _
  // Predicated region
  $region6: #{gcn2017_apply_padded.7} parent=0 // pred_check
    _
  $region7: #{gcn2017_apply_padded.7} parent=0 // pred_check_branch
    %11 = sbr.rel (0) target = $region9
  $region8: #{gcn2017_apply_padded.7} parent=0 // pred_region
    _
  $region9: #{gcn2017_apply_padded.7} parent=0 // pred_fallthru
    _
  // Predicated region
  $region10: #{gcn2017_apply_padded.7} parent=0 // pred_check
    _
  $region11: #{gcn2017_apply_padded.7} parent=0 // pred_check_branch
    %13 = sbr.rel (0) target = $region13
  $region12: #{gcn2017_apply_padded.7} parent=0 // pred_region
    _
  $region13: #{gcn2017_apply_padded.7} parent=0 // pred_fallthru
    _
  %v14 = vld [vmem:[%s0] sm:$0xf]
  %v15 = vld [vmem:[%s0 + $0x4] sm:$0xf]
  %v16 = vld [vmem:[%s0 + $0x8] sm:$0xf]
  %v17 = vld [vmem:[%s0 + $0xc] sm:$0xf]
  %v18 = vld [vmem:[%s0 + $0x10] sm:$0xf]
  %v19 = vld [vmem:[%s0 + $0x14] sm:$0xf]
  %v20 = vld [vmem:[%s0 + $0x18] sm:$0xf]
  %v21 = vld [vmem:[%s0 + $0x1c] sm:$0xf]
  %v22 = vld [vmem:[%s0 + $0x20] sm:$0xf]
  %v23 = vld [vmem:[%s0 + $0x24] sm:$0xf]
  %v24 = vld [vmem:[%s0 + $0x28] sm:$0xf]
  %v25 = vld [vmem:[%s0 + $0x2c] sm:$0xf]
  %v26 = vld [vmem:[%s0 + $0x30] sm:$0xf]
  %v27 = vld [vmem:[%s0 + $0x34] sm:$0xf]
  %v28 = vld [vmem:[%s0 + $0x38] sm:$0xf]
  %v29 = vld [vmem:[%s0 + $0x3c] sm:$0xf]
  %v30 = vld [vmem:[%s1] sm:$0xf]
  %v31 = vld [vmem:[%s1 + $0x4] sm:$0xf]
  %v32 = vld [vmem:[%s1 + $0x8] sm:$0xf]
  %v33 = vld [vmem:[%s1 + $0xc] sm:$0xf]
  %v34 = vld [vmem:[%s1 + $0x10] sm:$0xf]
  %v35 = vld [vmem:[%s1 + $0x14] sm:$0xf]
  %v36 = vld [vmem:[%s1 + $0x18] sm:$0xf]
  %v37 = vld [vmem:[%s1 + $0x1c] sm:$0xf]
  %v38 = vld [vmem:[%s1 + $0x20] sm:$0xf]
  %v39 = vld [vmem:[%s1 + $0x24] sm:$0xf]
  %v40 = vld [vmem:[%s1 + $0x28] sm:$0xf]
  %v41 = vld [vmem:[%s1 + $0x2c] sm:$0xf]
  %v42 = vld [vmem:[%s1 + $0x30] sm:$0xf]
  %v43 = vld [vmem:[%s1 + $0x34] sm:$0xf]
  %v44 = vld [vmem:[%s1 + $0x38] sm:$0xf]
  %v45 = vld [vmem:[%s1 + $0x3c] sm:$0xf]
  %v46 = vld [vmem:[%s2] sm:$0x1]
  %v48 = vperm.slane %v46, 0
  %v66 = vunpack.c.l.b16 %v14
  %v67 = vunpack.c.l.b16 %v15
  %v68 = vunpack.c.l.b16 %v16
  %v69 = vunpack.c.l.b16 %v17
  %v70 = vunpack.c.l.b16 %v18
  %v71 = vunpack.c.l.b16 %v19
  %v72 = vunpack.c.l.b16 %v20
  %v73 = vunpack.c.l.b16 %v21
  %v74 = vunpack.c.l.b16 %v22
  %v75 = vunpack.c.l.b16 %v23
  %v76 = vunpack.c.l.b16 %v24
  %v77 = vunpack.c.l.b16 %v25
  %v78 = vunpack.c.l.b16 %v26
  %v79 = vunpack.c.l.b16 %v27
  %v80 = vunpack.c.l.b16 %v28
  %v81 = vunpack.c.l.b16 %v29
  %v82 = vpack.c.b16 %v67, %v66
  %v83 = vpack.c.b16 %v69, %v68
  %v84 = vpack.c.b16 %v71, %v70
  %v85 = vpack.c.b16 %v73, %v72
  %v86 = vpack.c.b16 %v75, %v74
  %v87 = vpack.c.b16 %v77, %v76
  %v88 = vpack.c.b16 %v79, %v78
  %v89 = vpack.c.b16 %v81, %v80
  %v114 = vunpack.c.l.b16 %v30
  %v115 = vunpack.c.l.b16 %v31
  %v116 = vunpack.c.l.b16 %v32
  %v117 = vunpack.c.l.b16 %v33
  %v118 = vunpack.c.l.b16 %v34
  %v119 = vunpack.c.l.b16 %v35
  %v120 = vunpack.c.l.b16 %v36
  %v121 = vunpack.c.l.b16 %v37
  %v122 = vunpack.c.l.b16 %v38
  %v123 = vunpack.c.l.b16 %v39
  %v124 = vunpack.c.l.b16 %v40
  %v125 = vunpack.c.l.b16 %v41
  %v126 = vunpack.c.l.b16 %v42
  %v127 = vunpack.c.l.b16 %v43
  %v128 = vunpack.c.l.b16 %v44
  %v129 = vunpack.c.l.b16 %v45
  %v130 = vpack.c.b16 %v115, %v114
  %v131 = vpack.c.b16 %v117, %v116
  %v132 = vpack.c.b16 %v119, %v118
  %v133 = vpack.c.b16 %v121, %v120
  %v134 = vpack.c.b16 %v123, %v122
  %v135 = vpack.c.b16 %v125, %v124
  %v136 = vpack.c.b16 %v127, %v126
  %v137 = vpack.c.b16 %v129, %v128
  %146 = vmatpush.bf16.msra.mxu0 %v137
  %147 = vmatpush.bf16.msra.mxu0 %v136
  %148 = vmatpush.bf16.msra.mxu0 %v135
  %149 = vmatpush.bf16.msra.mxu0 %v134
  %150 = vmatpush.bf16.msra.mxu0 %v133
  %151 = vmatpush.bf16.msra.mxu0 %v132
  %152 = vmatpush.bf16.msra.mxu0 %v131
  %153 = vmatpush.bf16.msra.mxu0 %v130
  %154 = vmatmul.bf16.gmra.mxu0 %v82
  %v155 = vpop.f32.mrf.mxu0
  %v156 = vadd.f32 %v48, %v155
  %v157 = vpop.f32.mrf.mxu0
  %v158 = vadd.f32 %v48, %v157
  %159 = vmatmul.bf16.gmra.mxu0 %v83
  %v160 = vpop.f32.mrf.mxu0
  %v161 = vadd.f32 %v48, %v160
  %v162 = vpop.f32.mrf.mxu0
  %v163 = vadd.f32 %v48, %v162
  %164 = vmatmul.bf16.gmra.mxu0 %v84
  %v165 = vpop.f32.mrf.mxu0
  %v166 = vadd.f32 %v48, %v165
  %v167 = vpop.f32.mrf.mxu0
  %v168 = vadd.f32 %v48, %v167
  %169 = vmatmul.bf16.gmra.mxu0 %v85
  %v170 = vpop.f32.mrf.mxu0
  %v171 = vadd.f32 %v48, %v170
  %v172 = vpop.f32.mrf.mxu0
  %v173 = vadd.f32 %v48, %v172
  %174 = vmatmul.bf16.gmra.mxu0 %v86
  %v175 = vpop.f32.mrf.mxu0
  %v176 = vadd.f32 %v48, %v175
  %v177 = vpop.f32.mrf.mxu0
  %v178 = vadd.f32 %v48, %v177
  %179 = vmatmul.bf16.gmra.mxu0 %v87
  %v180 = vpop.f32.mrf.mxu0
  %v181 = vadd.f32 %v48, %v180
  %v182 = vpop.f32.mrf.mxu0
  %v183 = vadd.f32 %v48, %v182
  %184 = vmatmul.bf16.gmra.mxu0 %v88
  %v185 = vpop.f32.mrf.mxu0
  %v186 = vadd.f32 %v48, %v185
  %v187 = vpop.f32.mrf.mxu0
  %v188 = vadd.f32 %v48, %v187
  %189 = vmatmul.bf16.gmra.mxu0 %v89
  %v190 = vpop.f32.mrf.mxu0
  %v191 = vadd.f32 %v48, %v190
  %v192 = vpop.f32.mrf.mxu0
  %v193 = vadd.f32 %v48, %v192
  %194 = vdwg.mxu0
  %195 = vst [vmem:[%s3] sm:$0xff] %v156
  %196 = vst [vmem:[%s3 + $0x8] sm:$0xff] %v158
  %197 = vst [vmem:[%s3 + $0x10] sm:$0xff] %v161
  %198 = vst [vmem:[%s3 + $0x18] sm:$0xff] %v163
  %199 = vst [vmem:[%s3 + $0x20] sm:$0xff] %v166
  %200 = vst [vmem:[%s3 + $0x28] sm:$0xff] %v168
  %201 = vst [vmem:[%s3 + $0x30] sm:$0xff] %v171
  %202 = vst [vmem:[%s3 + $0x38] sm:$0xff] %v173
  %203 = vst [vmem:[%s3 + $0x40] sm:$0xff] %v176
  %204 = vst [vmem:[%s3 + $0x48] sm:$0xff] %v178
  %205 = vst [vmem:[%s3 + $0x50] sm:$0xff] %v181
  %206 = vst [vmem:[%s3 + $0x58] sm:$0xff] %v183
  %207 = vst [vmem:[%s3 + $0x60] sm:$0xff] %v186
  %208 = vst [vmem:[%s3 + $0x68] sm:$0xff] %v188
  %209 = vst [vmem:[%s3 + $0x70] sm:$0xff] %v191
  %210 = vst [vmem:[%s3 + $0x78] sm:$0xff] %v193
  // Predicated region
  $region14: #{gcn2017_apply_padded.7} parent=0 // pred_check
    _
  $region15: #{gcn2017_apply_padded.7} parent=0 // pred_check_branch
    %212 = sbr.rel (0) target = $region17
  $region16: #{gcn2017_apply_padded.7} parent=0 // pred_region
    _
  $region17: #{gcn2017_apply_padded.7} parent=0 // pred_fallthru
    _
  // Predicated region
  $region18: #{gcn2017_apply_padded.7} parent=0 // pred_check
    _
  $region19: #{gcn2017_apply_padded.7} parent=0 // pred_check_branch
    %214 = sbr.rel (0) target = $region21
  $region20: #{gcn2017_apply_padded.7} parent=0 // pred_region
    _
  $region21: #{gcn2017_apply_padded.7} parent=0 // pred_fallthru
    _

</llo_original>
